<compile_context>
chip_gen: v7x
topology: tpu7x:2x2x1
jax: 0.10.0
libtpu: 0.0.40
codegen_flags: <defaults>
</compile_context>

<pallas_src>
import jax
import jax.numpy as jnp
from jax.experimental import pallas as pl
from jax.experimental.pallas import tpu as pltpu


# ----------------------------------------------------------------------------
# Fused kernel: per-(batch, q-tile) key projection + R folded bilinear scores
# ----------------------------------------------------------------------------
def _fused_kernel(x1_ref, x2_ref, wk_ref, bk_ref, wqb_ref, bb_ref, o_ref):
    # x1:  (1, TQ, hd)   q-row tile for this grid step
    # x2:  (1, S,  hd)   full key sequence for this batch
    # wk:  (hd, qk), bk: (1, qk)
    # wqb: (R, hd, qk)   Wq @ W_rel[r]   (q projection folded in)
    # bb:  (R, 1, qk)    bq @ W_rel[r]
    # o:   (1, R, TQ, S)
    x1 = x1_ref[0]  # (TQ, hd)
    x2 = x2_ref[0]  # (S, hd)

    # Key projection, recomputed per q-tile (tiny (S,hd)x(hd,qk) MXU matmul).
    k = jnp.dot(x2, wk_ref[...], preferred_element_type=jnp.float32) + bk_ref[...]  # (S, qk)
    # Single hoisted transpose (XLU), shared by all R bilinear matmuls below.
    kT = k.T  # (qk, S)

    R = o_ref.shape[1]
    for r in range(R):  # static, small R — fully unrolled
        # K=hd-deep MXU matmul; major-axis ref index wqb_ref[r] is free (no
        # sub-lane slicing even when qk % 128 != 0).
        tmp_r = (
            jnp.dot(x1, wqb_ref[r], preferred_element_type=jnp.float32) + bb_ref[r]
        )  # (TQ, qk)
        out_r = jnp.dot(tmp_r, kT, preferred_element_type=jnp.float32)  # (TQ, S)
        o_ref[0, r] = out_r.astype(o_ref.dtype)


def _choose_tq(S, R, out_itemsize, budget_bytes=8 << 20):
    """Largest q-tile whose double-buffered output block fits the VMEM budget.

    Budget is sized for the smallest default scoped-VMEM limit (16 MiB on v5e);
    on v6e/v7x this leaves ample headroom for the input/weight blocks.
    """
    max_tq = budget_bytes // (2 * R * S * out_itemsize)
    if max_tq >= S:
        return S
    tq = min(S, max(8, (max_tq // 8) * 8))
    tq = (tq // 8) * 8
    while tq >= 8:
        if S % tq == 0:
            return tq
        tq -= 8
    return S  # fallback: no clean multiple-of-8 divisor — use the full extent


def fused_forward(x1, x2, Wk, bk, Wq_big, b_big, *, out_dtype=jnp.float32):
    B, S, hd = x1.shape
    R, _, qk = Wq_big.shape
    out_itemsize = jnp.dtype(out_dtype).itemsize
    TQ = _choose_tq(S, R, out_itemsize)
    n_q = S // TQ

    # Advisory cost hint for XLA's scheduler (kernel is HBM-writeback bound).
    flops = (
        B * n_q * 2 * S * hd * qk      # k projection (recomputed per q-tile)
        + B * R * 2 * S * hd * qk      # folded q-projection x relation matmul
        + B * R * 2 * S * qk * S       # bilinear scores
    )
    bytes_accessed = (
        (x1.size + x2.size) * x1.dtype.itemsize
        + (Wk.size + bk.size + Wq_big.size + b_big.size) * Wk.dtype.itemsize
        + B * R * S * S * out_itemsize
    )

    return pl.pallas_call(
        _fused_kernel,
        out_shape=jax.ShapeDtypeStruct((B, R, S, S), out_dtype),
        grid=(B, n_q),
        in_specs=[
            pl.BlockSpec((1, TQ, hd), lambda b, qi: (b, qi, 0)),
            pl.BlockSpec((1, S, hd), lambda b, qi: (b, 0, 0)),
            pl.BlockSpec((hd, qk), lambda b, qi: (0, 0)),        # constant block idx:
            pl.BlockSpec((1, qk), lambda b, qi: (0, 0)),         # weight DMAs skipped
            pl.BlockSpec((R, hd, qk), lambda b, qi: (0, 0, 0)),  # across grid steps
            pl.BlockSpec((R, 1, qk), lambda b, qi: (0, 0, 0)),
        ],
        out_specs=pl.BlockSpec((1, R, TQ, S), lambda b, qi: (b, 0, qi, 0)),
        compiler_params=pltpu.CompilerParams(
            # Both axes parallel: v7x's two TensorCores split work within a
            # batch (not only across batches); no carried state (k recomputed).
            dimension_semantics=("parallel", "parallel"),
        ),
        cost_estimate=pl.CostEstimate(
            flops=flops, transcendentals=0, bytes_accessed=bytes_accessed
        ),
    )(x1, x2, Wk, bk, Wq_big, b_big)


# ----------------------------------------------------------------------------
# Wrapper matching TensorDecoposition.forward
# ----------------------------------------------------------------------------
def tensor_decomposition_forward(x1, x2, params, *, out_dtype=jnp.float32):
    Wq, bq, Wk, bk, core, rel_emb = (
        params["Wq"], params["bq"], params["Wk"], params["bk"],
        params["core"], params["rel_emb"],
    )
    # Parameter-only preprocessing (hoisted out of the per-token hot path;
    # cacheable across calls while the weights are fixed):
    #   W_rel[r]  = sum_d core[:, :, d] * rel_emb[r, d]     (R, qk, qk)
    #   Wq_big[r] = Wq @ W_rel[r]                           (hd, qk)
    #   b_big[r]  = bq @ W_rel[r]                           (1, qk)
    W_rel = jnp.einsum("knd,rd->rkn", core, rel_emb)
    Wq_big = jnp.einsum("hk,rkn->rhn", Wq, W_rel)
    b_big = jnp.einsum("ok,rkn->ron", bq, W_rel)
    return fused_forward(x1, x2, Wk, bk, Wq_big, b_big, out_dtype=out_dtype)


# ----------------------------------------------------------------------------
# Deterministic parameter init (xavier-uniform-like)
# ----------------------------------------------------------------------------
def _xavier_uniform(key, shape, fan_in, fan_out):
    bound = (6.0 / (fan_in + fan_out)) ** 0.5
    return jax.random.uniform(key, shape, jnp.float32, -bound, bound)


def init_params(key, hd, qk_hd, rel_hd, num_heads):
    k1, k2, k3, k4 = jax.random.split(key, 4)
    # Linear weights stored transposed: (hd, qk) so that y = x @ W + b.
    Wq = _xavier_uniform(k1, (hd, qk_hd), fan_in=hd, fan_out=qk_hd)
    Wk = _xavier_uniform(k2, (hd, qk_hd), fan_in=hd, fan_out=qk_hd)
    bq = jnp.zeros((1, qk_hd), jnp.float32)
    bk = jnp.zeros((1, qk_hd), jnp.float32)
    core = _xavier_uniform(
        k3, (qk_hd, qk_hd, rel_hd), fan_in=qk_hd * rel_hd, fan_out=qk_hd * rel_hd
    )
    rel_emb = _xavier_uniform(k4, (num_heads, rel_hd), fan_in=rel_hd, fan_out=num_heads)
    return dict(Wq=Wq, bq=bq, Wk=Wk, bk=bk, core=core, rel_emb=rel_emb)


# ----------------------------------------------------------------------------
# Pure-JAX reference (mirrors the torch einsum chain exactly)
# ----------------------------------------------------------------------------
def reference_forward(x1, x2, params):
    q = x1 @ params["Wq"] + params["bq"][0]
    k = x2 @ params["Wk"] + params["bk"][0]
    t = jnp.einsum("ijk,knd->ijnd", q, params["core"])
    t = jnp.einsum("imn,ijnd->ijmd", k, t)
    t = jnp.einsum("rd,ijmd->ijmr", params["rel_emb"], t)
    return jnp.einsum("ijmr->irjm", t)


if __name__ == "__main__":
    # Small, module-consistent shapes.
    B, S = 2, 8
    hd = 32          # targetHiddenDim
    qk_hd = 16       # relationLinearpara
    rel_hd = 8       # relationHiddenDim
    num_heads = 4    # relationNum

    key = jax.random.PRNGKey(0)
    kx1, kx2, kp = jax.random.split(key, 3)
    x1 = jax.random.normal(kx1, (B, S, hd), jnp.float32)
    x2 = jax.random.normal(kx2, (B, S, hd), jnp.float32)
    params = init_params(kp, hd, qk_hd, rel_hd, num_heads)

    out = tensor_decomposition_forward(x1, x2, params)
    out = jax.block_until_ready(out)

    ref = reference_forward(x1, x2, params)
    assert out.shape == (B, num_heads, S, S), out.shape
    # Note: folding rel_hd/Wq into the relation weights changes fp32 rounding
    # order vs the torch chain; results agree to ~1e-4.
    assert jnp.allclose(out, ref, atol=1e-4, rtol=1e-4), "mismatch vs reference"

    print("KERNEL_OK")
</pallas_src>

<mosaic_0001>
module attributes {stable_mosaic.version = 11 : i64} {
  func.func @_fused_kernel(%arg0: i32, %arg1: i32, %arg2: memref<1x8x32xf32, #tpu.memory_space<vmem>>, %arg3: memref<1x8x32xf32, #tpu.memory_space<vmem>>, %arg4: memref<32x16xf32, #tpu.memory_space<vmem>>, %arg5: memref<1x16xf32, #tpu.memory_space<vmem>>, %arg6: memref<4x32x16xf32, #tpu.memory_space<vmem>>, %arg7: memref<4x1x16xf32, #tpu.memory_space<vmem>>, %arg8: memref<1x4x8x8xf32, #tpu.memory_space<vmem>>) attributes {dimension_semantics = [#tpu.dimension_semantics<parallel>, #tpu.dimension_semantics<parallel>], iteration_bounds = array<i64: 2, 1>, scalar_prefetch = 0 : i64, scratch_operands = 0 : i64, tpu.core_type = #tpu.core_type<tc>, window_params = [{transform_indices = @transform_0, window_bounds = array<i64: 1, 8, 32>}, {transform_indices = @transform_1, window_bounds = array<i64: 1, 8, 32>}, {pipeline_mode = #tpu.pipeline_mode<synchronous>, transform_indices = @transform_2, window_bounds = array<i64: 32, 16>}, {pipeline_mode = #tpu.pipeline_mode<synchronous>, transform_indices = @transform_3, window_bounds = array<i64: 1, 16>}, {pipeline_mode = #tpu.pipeline_mode<synchronous>, transform_indices = @transform_4, window_bounds = array<i64: 4, 32, 16>}, {pipeline_mode = #tpu.pipeline_mode<synchronous>, transform_indices = @transform_5, window_bounds = array<i64: 4, 1, 16>}, {transform_indices = @transform_6, window_bounds = array<i64: 1, 4, 8, 8>}]} {
    %c0 = arith.constant 0 : index
    %c0_0 = arith.constant 0 : index
    %c0_1 = arith.constant 0 : index
    %0 = vector.load %arg2[%c0, %c0_0, %c0_1] : memref<1x8x32xf32, #tpu.memory_space<vmem>>, vector<1x8x32xf32>
    %1 = vector.shape_cast %0 : vector<1x8x32xf32> to vector<8x32xf32>
    %c0_2 = arith.constant 0 : index
    %c0_3 = arith.constant 0 : index
    %c0_4 = arith.constant 0 : index
    %2 = vector.load %arg3[%c0_2, %c0_3, %c0_4] : memref<1x8x32xf32, #tpu.memory_space<vmem>>, vector<1x8x32xf32>
    %3 = vector.shape_cast %2 : vector<1x8x32xf32> to vector<8x32xf32>
    %c0_5 = arith.constant 0 : index
    %c0_6 = arith.constant 0 : index
    %4 = vector.load %arg4[%c0_5, %c0_6] : memref<32x16xf32, #tpu.memory_space<vmem>>, vector<32x16xf32>
    %cst = arith.constant dense<0.000000e+00> : vector<8x16xf32>
    %5 = tpu.matmul %3, %4, %cst {dimension_numbers = #tpu.dot_dimension_numbers<[1], [0], [0], [1], [0, 0, 1, 1], [], []>} : vector<8x32xf32>, vector<32x16xf32>, vector<8x16xf32> -> vector<8x16xf32>
    %c0_7 = arith.constant 0 : index
    %c0_8 = arith.constant 0 : index
    %6 = vector.load %arg5[%c0_7, %c0_8] : memref<1x16xf32, #tpu.memory_space<vmem>>, vector<1x16xf32>
    %7 = vector.broadcast %6 : vector<1x16xf32> to vector<8x16xf32>
    %8 = arith.addf %5, %7 : vector<8x16xf32>
    %9 = tpu.transpose %8, [1, 0] : vector<8x16xf32> -> vector<16x8xf32>
    %c0_9 = arith.constant 0 : index
    %c0_10 = arith.constant 0 : index
    %c0_11 = arith.constant 0 : index
    %10 = vector.load %arg6[%c0_9, %c0_10, %c0_11] : memref<4x32x16xf32, #tpu.memory_space<vmem>>, vector<1x32x16xf32>
    %11 = vector.shape_cast %10 : vector<1x32x16xf32> to vector<32x16xf32>
    %cst_12 = arith.constant dense<0.000000e+00> : vector<8x16xf32>
    %12 = tpu.matmul %1, %11, %cst_12 {dimension_numbers = #tpu.dot_dimension_numbers<[1], [0], [0], [1], [0, 0, 1, 1], [], []>} : vector<8x32xf32>, vector<32x16xf32>, vector<8x16xf32> -> vector<8x16xf32>
    %c0_13 = arith.constant 0 : index
    %c0_14 = arith.constant 0 : index
    %c0_15 = arith.constant 0 : index
    %13 = vector.load %arg7[%c0_13, %c0_14, %c0_15] : memref<4x1x16xf32, #tpu.memory_space<vmem>>, vector<1x1x16xf32>
    %14 = vector.shape_cast %13 : vector<1x1x16xf32> to vector<1x16xf32>
    %15 = vector.broadcast %14 : vector<1x16xf32> to vector<8x16xf32>
    %16 = arith.addf %12, %15 : vector<8x16xf32>
    %cst_16 = arith.constant dense<0.000000e+00> : vector<8x8xf32>
    %17 = tpu.matmul %16, %9, %cst_16 {dimension_numbers = #tpu.dot_dimension_numbers<[1], [0], [0], [1], [0, 0, 1, 1], [], []>} : vector<8x16xf32>, vector<16x8xf32>, vector<8x8xf32> -> vector<8x8xf32>
    %c0_17 = arith.constant 0 : index
    %c0_18 = arith.constant 0 : index
    %c0_19 = arith.constant 0 : index
    %c0_20 = arith.constant 0 : index
    %18 = vector.load %arg8[%c0_17, %c0_18, %c0_19, %c0_20] : memref<1x4x8x8xf32, #tpu.memory_space<vmem>>, vector<1x1x8x8xf32>
    %19 = vector.shape_cast %18 : vector<1x1x8x8xf32> to vector<8x8xf32>
    %20 = vector.shape_cast %17 : vector<8x8xf32> to vector<1x1x8x8xf32>
    tpu.vector_store %arg8[%c0_17, %c0_18, %c0_19, %c0_20], %20 {strides = array<i32>} : memref<1x4x8x8xf32, #tpu.memory_space<vmem>>, vector<1x1x8x8xf32>,
    %c1 = arith.constant 1 : index
    %c0_21 = arith.constant 0 : index
    %c0_22 = arith.constant 0 : index
    %21 = vector.load %arg6[%c1, %c0_21, %c0_22] : memref<4x32x16xf32, #tpu.memory_space<vmem>>, vector<1x32x16xf32>
    %22 = vector.shape_cast %21 : vector<1x32x16xf32> to vector<32x16xf32>
    %cst_23 = arith.constant dense<0.000000e+00> : vector<8x16xf32>
    %23 = tpu.matmul %1, %22, %cst_23 {dimension_numbers = #tpu.dot_dimension_numbers<[1], [0], [0], [1], [0, 0, 1, 1], [], []>} : vector<8x32xf32>, vector<32x16xf32>, vector<8x16xf32> -> vector<8x16xf32>
    %c1_24 = arith.constant 1 : index
    %c0_25 = arith.constant 0 : index
    %c0_26 = arith.constant 0 : index
    %24 = vector.load %arg7[%c1_24, %c0_25, %c0_26] : memref<4x1x16xf32, #tpu.memory_space<vmem>>, vector<1x1x16xf32>
    %25 = vector.shape_cast %24 : vector<1x1x16xf32> to vector<1x16xf32>
    %26 = vector.broadcast %25 : vector<1x16xf32> to vector<8x16xf32>
    %27 = arith.addf %23, %26 : vector<8x16xf32>
    %cst_27 = arith.constant dense<0.000000e+00> : vector<8x8xf32>
    %28 = tpu.matmul %27, %9, %cst_27 {dimension_numbers = #tpu.dot_dimension_numbers<[1], [0], [0], [1], [0, 0, 1, 1], [], []>} : vector<8x16xf32>, vector<16x8xf32>, vector<8x8xf32> -> vector<8x8xf32>
    %c0_28 = arith.constant 0 : index
    %c1_29 = arith.constant 1 : index
    %c0_30 = arith.constant 0 : index
    %c0_31 = arith.constant 0 : index
    %29 = vector.load %arg8[%c0_28, %c1_29, %c0_30, %c0_31] : memref<1x4x8x8xf32, #tpu.memory_space<vmem>>, vector<1x1x8x8xf32>
    %30 = vector.shape_cast %29 : vector<1x1x8x8xf32> to vector<8x8xf32>
    %31 = vector.shape_cast %28 : vector<8x8xf32> to vector<1x1x8x8xf32>
    tpu.vector_store %arg8[%c0_28, %c1_29, %c0_30, %c0_31], %31 {strides = array<i32>} : memref<1x4x8x8xf32, #tpu.memory_space<vmem>>, vector<1x1x8x8xf32>,
    %c2 = arith.constant 2 : index
    %c0_32 = arith.constant 0 : index
    %c0_33 = arith.constant 0 : index
    %32 = vector.load %arg6[%c2, %c0_32, %c0_33] : memref<4x32x16xf32, #tpu.memory_space<vmem>>, vector<1x32x16xf32>
    %33 = vector.shape_cast %32 : vector<1x32x16xf32> to vector<32x16xf32>
    %cst_34 = arith.constant dense<0.000000e+00> : vector<8x16xf32>
    %34 = tpu.matmul %1, %33, %cst_34 {dimension_numbers = #tpu.dot_dimension_numbers<[1], [0], [0], [1], [0, 0, 1, 1], [], []>} : vector<8x32xf32>, vector<32x16xf32>, vector<8x16xf32> -> vector<8x16xf32>
    %c2_35 = arith.constant 2 : index
    %c0_36 = arith.constant 0 : index
    %c0_37 = arith.constant 0 : index
    %35 = vector.load %arg7[%c2_35, %c0_36, %c0_37] : memref<4x1x16xf32, #tpu.memory_space<vmem>>, vector<1x1x16xf32>
    %36 = vector.shape_cast %35 : vector<1x1x16xf32> to vector<1x16xf32>
    %37 = vector.broadcast %36 : vector<1x16xf32> to vector<8x16xf32>
    %38 = arith.addf %34, %37 : vector<8x16xf32>
    %cst_38 = arith.constant dense<0.000000e+00> : vector<8x8xf32>
    %39 = tpu.matmul %38, %9, %cst_38 {dimension_numbers = #tpu.dot_dimension_numbers<[1], [0], [0], [1], [0, 0, 1, 1], [], []>} : vector<8x16xf32>, vector<16x8xf32>, vector<8x8xf32> -> vector<8x8xf32>
    %c0_39 = arith.constant 0 : index
    %c2_40 = arith.constant 2 : index
    %c0_41 = arith.constant 0 : index
    %c0_42 = arith.constant 0 : index
    %40 = vector.load %arg8[%c0_39, %c2_40, %c0_41, %c0_42] : memref<1x4x8x8xf32, #tpu.memory_space<vmem>>, vector<1x1x8x8xf32>
    %41 = vector.shape_cast %40 : vector<1x1x8x8xf32> to vector<8x8xf32>
    %42 = vector.shape_cast %39 : vector<8x8xf32> to vector<1x1x8x8xf32>
    tpu.vector_store %arg8[%c0_39, %c2_40, %c0_41, %c0_42], %42 {strides = array<i32>} : memref<1x4x8x8xf32, #tpu.memory_space<vmem>>, vector<1x1x8x8xf32>,
    %c3 = arith.constant 3 : index
    %c0_43 = arith.constant 0 : index
    %c0_44 = arith.constant 0 : index
    %43 = vector.load %arg6[%c3, %c0_43, %c0_44] : memref<4x32x16xf32, #tpu.memory_space<vmem>>, vector<1x32x16xf32>
    %44 = vector.shape_cast %43 : vector<1x32x16xf32> to vector<32x16xf32>
    %cst_45 = arith.constant dense<0.000000e+00> : vector<8x16xf32>
    %45 = tpu.matmul %1, %44, %cst_45 {dimension_numbers = #tpu.dot_dimension_numbers<[1], [0], [0], [1], [0, 0, 1, 1], [], []>} : vector<8x32xf32>, vector<32x16xf32>, vector<8x16xf32> -> vector<8x16xf32>
    %c3_46 = arith.constant 3 : index
    %c0_47 = arith.constant 0 : index
    %c0_48 = arith.constant 0 : index
    %46 = vector.load %arg7[%c3_46, %c0_47, %c0_48] : memref<4x1x16xf32, #tpu.memory_space<vmem>>, vector<1x1x16xf32>
    %47 = vector.shape_cast %46 : vector<1x1x16xf32> to vector<1x16xf32>
    %48 = vector.broadcast %47 : vector<1x16xf32> to vector<8x16xf32>
    %49 = arith.addf %45, %48 : vector<8x16xf32>
    %cst_49 = arith.constant dense<0.000000e+00> : vector<8x8xf32>
    %50 = tpu.matmul %49, %9, %cst_49 {dimension_numbers = #tpu.dot_dimension_numbers<[1], [0], [0], [1], [0, 0, 1, 1], [], []>} : vector<8x16xf32>, vector<16x8xf32>, vector<8x8xf32> -> vector<8x8xf32>
    %c0_50 = arith.constant 0 : index
    %c3_51 = arith.constant 3 : index
    %c0_52 = arith.constant 0 : index
    %c0_53 = arith.constant 0 : index
    %51 = vector.load %arg8[%c0_50, %c3_51, %c0_52, %c0_53] : memref<1x4x8x8xf32, #tpu.memory_space<vmem>>, vector<1x1x8x8xf32>
    %52 = vector.shape_cast %51 : vector<1x1x8x8xf32> to vector<8x8xf32>
    %53 = vector.shape_cast %50 : vector<8x8xf32> to vector<1x1x8x8xf32>
    tpu.vector_store %arg8[%c0_50, %c3_51, %c0_52, %c0_53], %53 {strides = array<i32>} : memref<1x4x8x8xf32, #tpu.memory_space<vmem>>, vector<1x1x8x8xf32>,
    return
  }
  func.func @transform_0(%arg0: i32, %arg1: i32) -> (i32, i32, i32) {
    %c0_i32 = arith.constant 0 : i32
    %c0_i32_0 = arith.constant 0 : i32
    return %arg0, %arg1, %c0_i32 : i32, i32, i32
  }
  func.func @transform_1(%arg0: i32, %arg1: i32) -> (i32, i32, i32) {
    %c0_i32 = arith.constant 0 : i32
    %c0_i32_0 = arith.constant 0 : i32
    %c0_i32_1 = arith.constant 0 : i32
    return %arg0, %c0_i32, %c0_i32_0 : i32, i32, i32
  }
  func.func @transform_2(%arg0: i32, %arg1: i32) -> (i32, i32) {
    %c0_i32 = arith.constant 0 : i32
    %c0_i32_0 = arith.constant 0 : i32
    %c0_i32_1 = arith.constant 0 : i32
    return %c0_i32, %c0_i32_0 : i32, i32
  }
  func.func @transform_3(%arg0: i32, %arg1: i32) -> (i32, i32) {
    %c0_i32 = arith.constant 0 : i32
    %c0_i32_0 = arith.constant 0 : i32
    %c0_i32_1 = arith.constant 0 : i32
    return %c0_i32, %c0_i32_0 : i32, i32
  }
  func.func @transform_4(%arg0: i32, %arg1: i32) -> (i32, i32, i32) {
    %c0_i32 = arith.constant 0 : i32
    %c0_i32_0 = arith.constant 0 : i32
    %c0_i32_1 = arith.constant 0 : i32
    %c0_i32_2 = arith.constant 0 : i32
    return %c0_i32, %c0_i32_0, %c0_i32_1 : i32, i32, i32
  }
  func.func @transform_5(%arg0: i32, %arg1: i32) -> (i32, i32, i32) {
    %c0_i32 = arith.constant 0 : i32
    %c0_i32_0 = arith.constant 0 : i32
    %c0_i32_1 = arith.constant 0 : i32
    %c0_i32_2 = arith.constant 0 : i32
    return %c0_i32, %c0_i32_0, %c0_i32_1 : i32, i32, i32
  }
  func.func @transform_6(%arg0: i32, %arg1: i32) -> (i32, i32, i32, i32) {
    %c0_i32 = arith.constant 0 : i32
    %c0_i32_0 = arith.constant 0 : i32
    %c0_i32_1 = arith.constant 0 : i32
    return %arg0, %c0_i32, %arg1, %c0_i32_0 : i32, i32, i32, i32
  }
}

</mosaic_0001>

<llo_original>
// kernel: tpu_custom_call.1
$region0: #{tpu_custom_call.1}
  #allocation0 [shape = 'u32[]', space=smem, size = 0x4, offset = 0x4, fixed_abs, tag = 'smem constant byte address 0x4 - core index']
  #allocation1 [shape = 'u32[144,128]{1,0:T(1,128)}', space=vmem, size = 0x12000, scoped, tag = 'internal scratch']
  %s0 = inlined_call_operand.vmem [shape: f32[2,8,32], index: 0, kind: input, shape index: {}]
  %s1 = inlined_call_operand.vmem [shape: f32[2,8,32], index: 1, kind: input, shape index: {}]
  %s2 = inlined_call_operand.vmem [shape: f32[32,16], index: 2, kind: input, shape index: {}]
  %s3 = inlined_call_operand.vmem [shape: f32[1,16], index: 3, kind: input, shape index: {}]
  %s4 = inlined_call_operand.vmem [shape: f32[4,32,16], index: 4, kind: input, shape index: {}]
  %s5 = inlined_call_operand.vmem [shape: f32[4,1,16], index: 5, kind: input, shape index: {}]
  %s6 = inlined_call_operand.hbm [shape: f32[2,4,8,8], index: 6, kind: output, shape index: {}]
  %s7 = sld [smem:[#allocation0]]
  $region57: #{tpu_custom_call.1} parent=0
    _
  %s9 = ssub.s32 1, %s7
  %s10 = scalar_select 0, %s9, %s7
  $region1: #{tpu_custom_call.1} parent=0
    #allocation2 [shape = 'u8[32768]{0}', space=vmem, size = 0x8000, scoped, tag = 'output window, operand 0']
    #allocation3 [shape = 's32[2]{0}', space=sflag, size = 0x8, scoped, tag = 'scoped memory for tpu_custom_call.1']
    %11 = vsyncpa [#allocation3], 0
    %s12 = scalar_lea.sflag [#allocation3], 1
    %13 = vsyncpa %s12, 0
    loop: start=0, step=1, limit=4
    $region2: #{tpu_custom_call.1} parent=1 // loop_pre_header
      _
    $region3: #{tpu_custom_call.1} parent=1 // loop_header
      %s15 = sphi 0, %s19
      %p16 = scmp.ge.s32.totalorder %s15, 4
      %s22 = sphi 0, %s34
      %s23 = sphi 0, %s30
      %s24 = sphi 0, %s22
      %s25 = sphi 0, %s23
      %s26 = sphi 0, %s24
      %s27 = sphi 0, %s25
      %s39 = sphi 0, %s41
      %s42 = sphi 0, %s39
      %s43 = sphi 0, %s42
      %s59 = sphi 0, %s43
      %s65 = sphi 0, %s67
      %s68 = sphi 0, %s65
      %s69 = sphi 0, %s68
      %s85 = sphi 0, %s69
      %s89 = sphi 0, %s89
      %s91 = sphi 0, %s89
      %s92 = sphi 0, %s91
      %s106 = sphi 0, %s92
      %s110 = sphi 0, %s110
      %s112 = sphi 0, %s110
      %s113 = sphi 0, %s112
      %s127 = sphi 0, %s113
      %s131 = sphi 0, %s131
      %s133 = sphi 0, %s131
      %s134 = sphi 0, %s133
      %s148 = sphi 0, %s134
      %s152 = sphi 0, %s152
      %s154 = sphi 0, %s152
      %s155 = sphi 0, %s154
      %s169 = sphi 0, %s155
      %s177 = sphi 0, %s179
      %s180 = sphi 0, %s177
      %s181 = sphi 0, %s180
      %s197 = sphi 0, %s181
    $region4: #{tpu_custom_call.1} parent=1 // loop_header_branch
      %18 = sbr.rel (%p16) target = $region8
    $region5: #{tpu_custom_call.1} parent=1 // loop_body
      %s20 = ssub.s32 %s15, 1
      %s21 = ssub.s32 %s15, 2
      %s28 = sadd.s32 1, %s23
      %p29 = scmp.ge.s32.totalorder %s28, 1
      %s30 = scalar_select %p29, 0, %s28
      %s31 = sadd.s32 1, %s22
      %s32 = scalar_select %p29, %s31, %s22
      %p33 = scmp.ge.s32.totalorder %s32, 2
      %s34 = scalar_select %p33, 0, %s32
      %s35 = ssub.s32 %s22, %s34
      %s36 = ssub.s32 %s23, %s30
      %s37 = sor.u32 %s35, %s36
      %p38 = scmp.eq.s32.totalorder %s37, 0
      %s40 = sadd.s32 %s39, 1
      %s41 = scalar_select %p38, %s39, %s40
      %p44 = pneg %p38
      %p45 = scmp.eq.s32.totalorder %s15, 1
      %p46 = por %p44, %p45
      %p47 = scmp.ne.s32.totalorder %s39, %s42
      %p48 = scmp.eq.s32.totalorder %s15, 0
      %p49 = por %p47, %p48
      %p50 = scmp.ne.s32.totalorder %s39, %s42
      %p51 = scmp.eq.s32.totalorder %s20, 1
      %p52 = por %p50, %p51
      %p53 = scmp.ne.s32.totalorder %s42, %s43
      %p54 = scmp.eq.s32.totalorder %s20, 0
      %p55 = por %p53, %p54
      %p56 = scmp.ne.s32.totalorder %s42, %s43
      %p57 = scmp.eq.s32.totalorder %s21, 1
      %p58 = por %p56, %p57
      %p60 = scmp.ne.s32.totalorder %s43, %s59
      %p61 = scmp.eq.s32.totalorder %s21, 0
      %p62 = por %p60, %p61
      %s63 = ssub.s32 %s22, %s34
      %p64 = scmp.eq.s32.totalorder %s63, 0
      %s66 = sadd.s32 %s65, 1
      %s67 = scalar_select %p64, %s65, %s66
      %p70 = pneg %p64
      %p71 = scmp.eq.s32.totalorder %s15, 1
      %p72 = por %p70, %p71
      %p73 = scmp.ne.s32.totalorder %s65, %s68
      %p74 = scmp.eq.s32.totalorder %s15, 0
      %p75 = por %p73, %p74
      %p76 = scmp.ne.s32.totalorder %s65, %s68
      %p77 = scmp.eq.s32.totalorder %s20, 1
      %p78 = por %p76, %p77
      %p79 = scmp.ne.s32.totalorder %s68, %s69
      %p80 = scmp.eq.s32.totalorder %s20, 0
      %p81 = por %p79, %p80
      %p82 = scmp.ne.s32.totalorder %s68, %s69
      %p83 = scmp.eq.s32.totalorder %s21, 1
      %p84 = por %p82, %p83
      %p86 = scmp.ne.s32.totalorder %s69, %s85
      %p87 = scmp.eq.s32.totalorder %s21, 0
      %p88 = por %p86, %p87
      %s90 = sadd.s32 %s89, 1
      %p93 = scmp.eq.s32.totalorder %s15, 1
      %p94 = scmp.ne.s32.totalorder %s89, %s91
      %p95 = scmp.eq.s32.totalorder %s15, 0
      %p96 = por %p94, %p95
      %p97 = scmp.ne.s32.totalorder %s89, %s91
      %p98 = scmp.eq.s32.totalorder %s20, 1
      %p99 = por %p97, %p98
      %p100 = scmp.ne.s32.totalorder %s91, %s92
      %p101 = scmp.eq.s32.totalorder %s20, 0
      %p102 = por %p100, %p101
      %p103 = scmp.ne.s32.totalorder %s91, %s92
      %p104 = scmp.eq.s32.totalorder %s21, 1
      %p105 = por %p103, %p104
      %p107 = scmp.ne.s32.totalorder %s92, %s106
      %p108 = scmp.eq.s32.totalorder %s21, 0
      %p109 = por %p107, %p108
      %s111 = sadd.s32 %s110, 1
      %p114 = scmp.eq.s32.totalorder %s15, 1
      %p115 = scmp.ne.s32.totalorder %s110, %s112
      %p116 = scmp.eq.s32.totalorder %s15, 0
      %p117 = por %p115, %p116
      %p118 = scmp.ne.s32.totalorder %s110, %s112
      %p119 = scmp.eq.s32.totalorder %s20, 1
      %p120 = por %p118, %p119
      %p121 = scmp.ne.s32.totalorder %s112, %s113
      %p122 = scmp.eq.s32.totalorder %s20, 0
      %p123 = por %p121, %p122
      %p124 = scmp.ne.s32.totalorder %s112, %s113
      %p125 = scmp.eq.s32.totalorder %s21, 1
      %p126 = por %p124, %p125
      %p128 = scmp.ne.s32.totalorder %s113, %s127
      %p129 = scmp.eq.s32.totalorder %s21, 0
      %p130 = por %p128, %p129
      %s132 = sadd.s32 %s131, 1
      %p135 = scmp.eq.s32.totalorder %s15, 1
      %p136 = scmp.ne.s32.totalorder %s131, %s133
      %p137 = scmp.eq.s32.totalorder %s15, 0
      %p138 = por %p136, %p137
      %p139 = scmp.ne.s32.totalorder %s131, %s133
      %p140 = scmp.eq.s32.totalorder %s20, 1
      %p141 = por %p139, %p140
      %p142 = scmp.ne.s32.totalorder %s133, %s134
      %p143 = scmp.eq.s32.totalorder %s20, 0
      %p144 = por %p142, %p143
      %p145 = scmp.ne.s32.totalorder %s133, %s134
      %p146 = scmp.eq.s32.totalorder %s21, 1
      %p147 = por %p145, %p146
      %p149 = scmp.ne.s32.totalorder %s134, %s148
      %p150 = scmp.eq.s32.totalorder %s21, 0
      %p151 = por %p149, %p150
      %s153 = sadd.s32 %s152, 1
      %p156 = scmp.eq.s32.totalorder %s15, 1
      %p157 = scmp.ne.s32.totalorder %s152, %s154
      %p158 = scmp.eq.s32.totalorder %s15, 0
      %p159 = por %p157, %p158
      %p160 = scmp.ne.s32.totalorder %s152, %s154
      %p161 = scmp.eq.s32.totalorder %s20, 1
      %p162 = por %p160, %p161
      %p163 = scmp.ne.s32.totalorder %s154, %s155
      %p164 = scmp.eq.s32.totalorder %s20, 0
      %p165 = por %p163, %p164
      %p166 = scmp.ne.s32.totalorder %s154, %s155
      %p167 = scmp.eq.s32.totalorder %s21, 1
      %p168 = por %p166, %p167
      %p170 = scmp.ne.s32.totalorder %s155, %s169
      %p171 = scmp.eq.s32.totalorder %s21, 0
      %p172 = por %p170, %p171
      %s173 = ssub.s32 %s22, %s34
      %s174 = ssub.s32 %s23, %s30
      %s175 = sor.u32 %s173, %s174
      %p176 = scmp.eq.s32.totalorder %s175, 0
      %s178 = sadd.s32 %s177, 1
      %s179 = scalar_select %p176, %s177, %s178
      %p182 = pneg %p176
      %p183 = scmp.eq.s32.totalorder %s15, 1
      %p184 = por %p182, %p183
      %p185 = scmp.ne.s32.totalorder %s177, %s180
      %p186 = scmp.eq.s32.totalorder %s15, 0
      %p187 = por %p185, %p186
      %p188 = scmp.ne.s32.totalorder %s177, %s180
      %p189 = scmp.eq.s32.totalorder %s20, 1
      %p190 = por %p188, %p189
      %p191 = scmp.ne.s32.totalorder %s180, %s181
      %p192 = scmp.eq.s32.totalorder %s20, 0
      %p193 = por %p191, %p192
      %p194 = scmp.ne.s32.totalorder %s180, %s181
      %p195 = scmp.eq.s32.totalorder %s21, 1
      %p196 = por %p194, %p195
      %p198 = scmp.ne.s32.totalorder %s181, %s197
      %p199 = scmp.eq.s32.totalorder %s21, 0
      %p200 = por %p198, %p199
      %p201 = scmp.le.s32.totalorder 1, %s15
      %p202 = scmp.lt.s32.totalorder %s15, 3
      %p203 = pnand %p201, %p202
      %p204 = pneg %p203
      // Predicated region
      $region9: #{tpu_custom_call.1} parent=5 // pred_check
        _
      $region10: #{tpu_custom_call.1} parent=5 // pred_check_branch
        %206 = sbr.rel (%p203) target = $region12
      $region11: #{tpu_custom_call.1} parent=5 // pred_region
        %s207 = ssub.s32 %s15, 1
        // Predicated region
        $region13: #{tpu_custom_call.1} parent=11 // pred_check
          %p208 = pneg %p102
        $region14: #{tpu_custom_call.1} parent=11 // pred_check_branch
          %210 = sbr.rel (%p208) target = $region16
        $region15: #{tpu_custom_call.1} parent=11 // pred_region
          _
        $region16: #{tpu_custom_call.1} parent=11 // pred_fallthru
          _
        // Predicated region
        $region17: #{tpu_custom_call.1} parent=11 // pred_check
          %p211 = pneg %p123
        $region18: #{tpu_custom_call.1} parent=11 // pred_check_branch
          %213 = sbr.rel (%p211) target = $region20
        $region19: #{tpu_custom_call.1} parent=11 // pred_region
          _
        $region20: #{tpu_custom_call.1} parent=11 // pred_fallthru
          _
        // Predicated region
        $region21: #{tpu_custom_call.1} parent=11 // pred_check
          %p214 = pneg %p144
        $region22: #{tpu_custom_call.1} parent=11 // pred_check_branch
          %216 = sbr.rel (%p214) target = $region24
        $region23: #{tpu_custom_call.1} parent=11 // pred_region
          _
        $region24: #{tpu_custom_call.1} parent=11 // pred_fallthru
          _
        // Predicated region
        $region25: #{tpu_custom_call.1} parent=11 // pred_check
          %p217 = pneg %p165
        $region26: #{tpu_custom_call.1} parent=11 // pred_check_branch
          %219 = sbr.rel (%p217) target = $region28
        $region27: #{tpu_custom_call.1} parent=11 // pred_region
          _
        $region28: #{tpu_custom_call.1} parent=11 // pred_fallthru
          _
      $region12: #{tpu_custom_call.1} parent=5 // pred_fallthru
        _
      %p220 = scmp.lt.s32.totalorder %s15, 2
      // Predicated region
      $region29: #{tpu_custom_call.1} parent=5 // pred_check
        %p221 = pneg %p220
      $region30: #{tpu_custom_call.1} parent=5 // pred_check_branch
        %223 = sbr.rel (%p221) target = $region32
      $region31: #{tpu_custom_call.1} parent=5 // pred_region
        // Predicated region
        $region33: #{tpu_custom_call.1} parent=31 // pred_check
          %p224 = pneg %p49
        $region34: #{tpu_custom_call.1} parent=31 // pred_check_branch
          %226 = sbr.rel (%p224) target = $region36
        $region35: #{tpu_custom_call.1} parent=31 // pred_region
          %p227 = scmp.lt.s32.totalorder %s22, 1
          %s228 = scalar_select %p227, %s22, 1
          %p229 = scmp.lt.s32.totalorder %s23, 0
          %s230 = scalar_select %p229, %s23, 0
          %s231 = sadd.s32 %s230, %s228
          %s232 = smul.addr %s231, 8
          %s233 = scalar_lea.vmem %s0, %s232
        $region36: #{tpu_custom_call.1} parent=31 // pred_fallthru
          _
        // Predicated region
        $region37: #{tpu_custom_call.1} parent=31 // pred_check
          %p234 = pneg %p75
        $region38: #{tpu_custom_call.1} parent=31 // pred_check_branch
          %236 = sbr.rel (%p234) target = $region40
        $region39: #{tpu_custom_call.1} parent=31 // pred_region
          %p237 = scmp.lt.s32.totalorder %s22, 1
          %s238 = scalar_select %p237, %s22, 1
          %s239 = smul.addr %s238, 8
          %s240 = scalar_lea.vmem %s1, %s239
        $region40: #{tpu_custom_call.1} parent=31 // pred_fallthru
          _
      $region32: #{tpu_custom_call.1} parent=5 // pred_fallthru
        _
      %p241 = scmp.le.s32.totalorder 1, %s15
      %p242 = scmp.lt.s32.totalorder %s15, 3
      %p243 = pnand %p241, %p242
      %p244 = pneg %p243
      // Predicated region
      $region41: #{tpu_custom_call.1} parent=5 // pred_check
        _
      $region42: #{tpu_custom_call.1} parent=5 // pred_check_branch
        %246 = sbr.rel (%p243) target = $region44
      $region43: #{tpu_custom_call.1} parent=5 // pred_region
        %s247 = ssub.s32 %s15, 1
        %p248 = scmp.lt.s32.totalorder %s24, 1
        %s249 = scalar_select %p248, %s24, 1
        %p250 = scmp.lt.s32.totalorder %s25, 0
        %s251 = scalar_select %p250, %s25, 0
        %s252 = sadd.s32 %s251, %s249
        %s253 = smul.addr %s252, 8
        %s254 = scalar_lea.vmem %s0, %s253
        %p255 = pneg %p55
        %p256 = pneg %p52
        %p257 = scmp.lt.s32.totalorder %s24, 1
        %s258 = scalar_select %p257, %s24, 1
        %s259 = smul.addr %s258, 8
        %s260 = scalar_lea.vmem %s1, %s259
        %p261 = pneg %p81
        %p262 = pneg %p78
        %p263 = pneg %p102
        %p264 = pneg %p99
        %p265 = pneg %p123
        %p266 = pneg %p120
        %p267 = pneg %p144
        %p268 = pneg %p141
        %p269 = pneg %p165
        %p270 = pneg %p162
        %p271 = pneg %p193
        %p272 = pneg %p190
        %s273 = sand.u32 %s180, 1
        %s274 = scalar_lea.sflag [#allocation3], %s273
        %s275 = sand.u32 %s180, 1
        %s276 = smul.addr %s275, 32
        %s277 = scalar_lea.vmem [#allocation2], %s276
        %p278 = scmp.lt.s32.totalorder %s24, 1
        %s279 = scalar_select %p278, %s24, 1
        %p280 = scmp.lt.s32.totalorder %s25, 0
        %s281 = scalar_select %p280, %s25, 0
        %s282 = sadd.s32 %s281, %s279
        %s283 = smul.addr %s282, 8
        %s284 = scalar_lea.vmem %s0, %s283
        %p285 = scmp.lt.s32.totalorder %s24, 1
        %s286 = scalar_select %p285, %s24, 1
        %s287 = smul.addr %s286, 8
        %s288 = scalar_lea.vmem %s1, %s287
        %v289 = vld [vmem:[%s284] sm:$0xff]
        %v290 = vld [vmem:[%s288] sm:$0xff]
        %v291 = vld [vmem:[%s2] sm:$0xff]
        %v292 = vld [vmem:[%s2 + $0x8] sm:$0xff]
        %v293 = vld [vmem:[%s2 + $0x10] sm:$0xff]
        %v294 = vld [vmem:[%s2 + $0x18] sm:$0xff]
        %v295 = vld [vmem:[%s3] sm:$0x1]
        %v297 = vlaneseq
        %v298 = vshrl.u32 %v297, 7
        %v299 = vsub.s32 0, %v298
        %v300 = vrot.slane %v295, %v299
        %vm302 = vcmask 261120
        %v304 = vsel %vm302, %v290, 0
        %306 = vmatprep.subr.mxu0 0.0
        %307 = vmatpush1.msra.mxu0 %v291
        %308 = vmatprep.subr.mxu0 0.0
        %309 = vmatpush1.msra.mxu0 %v292
        %310 = vmatprep.subr.mxu0 0.0
        %311 = vmatpush1.msra.mxu0 %v293
        %312 = vmatprep.subr.mxu0 0.0
        %313 = vmatpush1.msra.mxu0 %v294
        %314 = vmatprep.subr.mxu0 0.0
        %315 = vmatpush1.msra.mxu0 0.0
        %316 = vmatprep.subr.mxu0 0.0
        %317 = vmatpush1.msra.mxu0 0.0
        %318 = vmatprep.subr.mxu0 0.0
        %319 = vmatpush1.msra.mxu0 0.0
        %320 = vmatprep.subr.mxu0 0.0
        %321 = vmatpush1.msra.mxu0 0.0
        %322 = vmatprep.subr.mxu0 0.0
        %323 = vmatpush1.msra.mxu0 0.0
        %324 = vmatprep.subr.mxu0 0.0
        %325 = vmatpush1.msra.mxu0 0.0
        %326 = vmatprep.subr.mxu0 0.0
        %327 = vmatpush1.msra.mxu0 0.0
        %328 = vmatprep.subr.mxu0 0.0
        %329 = vmatpush1.msra.mxu0 0.0
        %330 = vmatprep.subr.mxu0 0.0
        %331 = vmatpush1.msra.mxu0 0.0
        %332 = vmatprep.subr.mxu0 0.0
        %333 = vmatpush1.msra.mxu0 0.0
        %334 = vmatprep.subr.mxu0 0.0
        %335 = vmatpush1.msra.mxu0 0.0
        %336 = vmatprep.subr.mxu0 0.0
        %337 = vmatpush1.msra.mxu0 0.0
        %338 = vmatprep.subr.mxu0 0.0
        %339 = vmatpush1.msra.mxu0 0.0
        %340 = vmatprep.subr.mxu0 0.0
        %341 = vmatpush1.msra.mxu0 0.0
        %342 = vmatprep.subr.mxu0 0.0
        %343 = vmatpush1.msra.mxu0 0.0
        %344 = vmatprep.subr.mxu0 0.0
        %345 = vmatpush1.msra.mxu0 0.0
        %346 = vmatprep.subr.mxu0 0.0
        %347 = vmatpush1.msra.mxu0 0.0
        %348 = vmatprep.subr.mxu0 0.0
        %349 = vmatpush1.msra.mxu0 0.0
        %350 = vmatprep.subr.mxu0 0.0
        %351 = vmatpush1.msra.mxu0 0.0
        %352 = vmatprep.subr.mxu0 0.0
        %353 = vmatpush1.msra.mxu0 0.0
        %354 = vmatprep.subr.mxu0 0.0
        %355 = vmatpush1.msra.mxu0 0.0
        %356 = vmatprep.subr.mxu0 0.0
        %357 = vmatpush1.msra.mxu0 0.0
        %358 = vmatprep.subr.mxu0 0.0
        %359 = vmatpush1.msra.mxu0 0.0
        %360 = vmatprep.subr.mxu0 0.0
        %361 = vmatpush1.msra.mxu0 0.0
        %362 = vmatprep.subr.mxu0 0.0
        %363 = vmatpush1.msra.mxu0 0.0
        %364 = vmatprep.subr.mxu0 0.0
        %365 = vmatpush1.msra.mxu0 0.0
        %366 = vmatprep.subr.mxu0 0.0
        %367 = vmatpush1.msra.mxu0 0.0
        %368 = vmatprep.subr.mxu0 0.0
        %369 = vmatpush1.msra.mxu0 0.0
        %370 = vmatprep.mubr.f32.mxu0 0.0
        %371 = vmatmul.mubr.f32.gmra.mrb[0].mxu0 %v304
        %v372 = vpop.f32.mrb[0].mxu0
        %v373 = vadd.f32 %v300, %v372
        %v374 = vpop.f32.mrb[0].mxu0
        %375 = vdwg.mxu0
        %v376 = vld [vmem:[%s4] sm:$0xff]
        %v377 = vld [vmem:[%s4 + $0x8] sm:$0xff]
        %v378 = vld [vmem:[%s4 + $0x10] sm:$0xff]
        %v379 = vld [vmem:[%s4 + $0x18] sm:$0xff]
        %v380 = vld [vmem:[%s5] sm:$0x1]
        %v382 = vlaneseq
        %v383 = vshrl.u32 %v382, 7
        %v384 = vsub.s32 0, %v383
        %v385 = vrot.slane %v380, %v384
        %v388 = vsel %vm302, %v289, 0
        %390 = vmatprep.subr.mxu0 0.0
        %391 = vmatpush1.msra.mxu0 %v376
        %392 = vmatprep.subr.mxu0 0.0
        %393 = vmatpush1.msra.mxu0 %v377
        %394 = vmatprep.subr.mxu0 0.0
        %395 = vmatpush1.msra.mxu0 %v378
        %396 = vmatprep.subr.mxu0 0.0
        %397 = vmatpush1.msra.mxu0 %v379
        %398 = vmatprep.subr.mxu0 0.0
        %399 = vmatpush1.msra.mxu0 0.0
        %400 = vmatprep.subr.mxu0 0.0
        %401 = vmatpush1.msra.mxu0 0.0
        %402 = vmatprep.subr.mxu0 0.0
        %403 = vmatpush1.msra.mxu0 0.0
        %404 = vmatprep.subr.mxu0 0.0
        %405 = vmatpush1.msra.mxu0 0.0
        %406 = vmatprep.subr.mxu0 0.0
        %407 = vmatpush1.msra.mxu0 0.0
        %408 = vmatprep.subr.mxu0 0.0
        %409 = vmatpush1.msra.mxu0 0.0
        %410 = vmatprep.subr.mxu0 0.0
        %411 = vmatpush1.msra.mxu0 0.0
        %412 = vmatprep.subr.mxu0 0.0
        %413 = vmatpush1.msra.mxu0 0.0
        %414 = vmatprep.subr.mxu0 0.0
        %415 = vmatpush1.msra.mxu0 0.0
        %416 = vmatprep.subr.mxu0 0.0
        %417 = vmatpush1.msra.mxu0 0.0
        %418 = vmatprep.subr.mxu0 0.0
        %419 = vmatpush1.msra.mxu0 0.0
        %420 = vmatprep.subr.mxu0 0.0
        %421 = vmatpush1.msra.mxu0 0.0
        %422 = vmatprep.subr.mxu0 0.0
        %423 = vmatpush1.msra.mxu0 0.0
        %424 = vmatprep.subr.mxu0 0.0
        %425 = vmatpush1.msra.mxu0 0.0
        %426 = vmatprep.subr.mxu0 0.0
        %427 = vmatpush1.msra.mxu0 0.0
        %428 = vmatprep.subr.mxu0 0.0
        %429 = vmatpush1.msra.mxu0 0.0
        %430 = vmatprep.subr.mxu0 0.0
        %431 = vmatpush1.msra.mxu0 0.0
        %432 = vmatprep.subr.mxu0 0.0
        %433 = vmatpush1.msra.mxu0 0.0
        %434 = vmatprep.subr.mxu0 0.0
        %435 = vmatpush1.msra.mxu0 0.0
        %436 = vmatprep.subr.mxu0 0.0
        %437 = vmatpush1.msra.mxu0 0.0
        %438 = vmatprep.subr.mxu0 0.0
        %439 = vmatpush1.msra.mxu0 0.0
        %440 = vmatprep.subr.mxu0 0.0
        %441 = vmatpush1.msra.mxu0 0.0
        %442 = vmatprep.subr.mxu0 0.0
        %443 = vmatpush1.msra.mxu0 0.0
        %444 = vmatprep.subr.mxu0 0.0
        %445 = vmatpush1.msra.mxu0 0.0
        %446 = vmatprep.subr.mxu0 0.0
        %447 = vmatpush1.msra.mxu0 0.0
        %448 = vmatprep.subr.mxu0 0.0
        %449 = vmatpush1.msra.mxu0 0.0
        %450 = vmatprep.subr.mxu0 0.0
        %451 = vmatpush1.msra.mxu0 0.0
        %452 = vmatprep.subr.mxu0 0.0
        %453 = vmatpush1.msra.mxu0 0.0
        %454 = vmatprep.mubr.f32.mxu0 0.0
        %455 = vmatmul.mubr.f32.gmra.mrb[0].mxu0 %v388
        %v456 = vpop.f32.mrb[0].mxu0
        %v457 = vadd.f32 %v385, %v456
        %v458 = vpop.f32.mrb[0].mxu0
        %459 = vdwg.mxu0
        %vm460 = vcmask 130048
        %v462 = vsel %vm460, %v457, 0
        %v465 = vsel %vm460, %v373, 0
        %467 = vmatprep.subr.mxu0 0.0
        %468 = vmatpush1.xpose.msra.mxu0 %v465
        %469 = vmatprep.subr.mxu0 0.0
        %470 = vmatpush1.xpose.msra.mxu0 0.0
        %471 = vmatprep.subr.mxu0 0.0
        %472 = vmatpush1.xpose.msra.mxu0 0.0
        %473 = vmatprep.subr.mxu0 0.0
        %474 = vmatpush1.xpose.msra.mxu0 0.0
        %475 = vmatprep.subr.mxu0 0.0
        %476 = vmatpush1.xpose.msra.mxu0 0.0
        %477 = vmatprep.subr.mxu0 0.0
        %478 = vmatpush1.xpose.msra.mxu0 0.0
        %479 = vmatprep.subr.mxu0 0.0
        %480 = vmatpush1.xpose.msra.mxu0 0.0
        %481 = vmatprep.subr.mxu0 0.0
        %482 = vmatpush1.xpose.msra.mxu0 0.0
        %483 = vmatprep.subr.mxu0 0.0
        %484 = vmatpush1.xpose.msra.mxu0 0.0
        %485 = vmatprep.subr.mxu0 0.0
        %486 = vmatpush1.xpose.msra.mxu0 0.0
        %487 = vmatprep.subr.mxu0 0.0
        %488 = vmatpush1.xpose.msra.mxu0 0.0
        %489 = vmatprep.subr.mxu0 0.0
        %490 = vmatpush1.xpose.msra.mxu0 0.0
        %491 = vmatprep.subr.mxu0 0.0
        %492 = vmatpush1.xpose.msra.mxu0 0.0
        %493 = vmatprep.subr.mxu0 0.0
        %494 = vmatpush1.xpose.msra.mxu0 0.0
        %495 = vmatprep.subr.mxu0 0.0
        %496 = vmatpush1.xpose.msra.mxu0 0.0
        %497 = vmatprep.subr.mxu0 0.0
        %498 = vmatpush1.xpose.msra.mxu0 0.0
        %499 = vmatprep.subr.mxu0 0.0
        %500 = vmatpush1.xpose.msra.mxu0 0.0
        %501 = vmatprep.subr.mxu0 0.0
        %502 = vmatpush1.xpose.msra.mxu0 0.0
        %503 = vmatprep.subr.mxu0 0.0
        %504 = vmatpush1.xpose.msra.mxu0 0.0
        %505 = vmatprep.subr.mxu0 0.0
        %506 = vmatpush1.xpose.msra.mxu0 0.0
        %507 = vmatprep.subr.mxu0 0.0
        %508 = vmatpush1.xpose.msra.mxu0 0.0
        %509 = vmatprep.subr.mxu0 0.0
        %510 = vmatpush1.xpose.msra.mxu0 0.0
        %511 = vmatprep.subr.mxu0 0.0
        %512 = vmatpush1.xpose.msra.mxu0 0.0
        %513 = vmatprep.subr.mxu0 0.0
        %514 = vmatpush1.xpose.msra.mxu0 0.0
        %515 = vmatprep.subr.mxu0 0.0
        %516 = vmatpush1.xpose.msra.mxu0 0.0
        %517 = vmatprep.subr.mxu0 0.0
        %518 = vmatpush1.xpose.msra.mxu0 0.0
        %519 = vmatprep.subr.mxu0 0.0
        %520 = vmatpush1.xpose.msra.mxu0 0.0
        %521 = vmatprep.subr.mxu0 0.0
        %522 = vmatpush1.xpose.msra.mxu0 0.0
        %523 = vmatprep.subr.mxu0 0.0
        %524 = vmatpush1.xpose.msra.mxu0 0.0
        %525 = vmatprep.subr.mxu0 0.0
        %526 = vmatpush1.xpose.msra.mxu0 0.0
        %527 = vmatprep.subr.mxu0 0.0
        %528 = vmatpush1.xpose.msra.mxu0 0.0
        %529 = vmatprep.subr.mxu0 0.0
        %530 = vmatpush1.xpose.msra.mxu0 0.0
        %531 = vmatprep.mubr.f32.mxu0 0.0
        %532 = vmatmul.mubr.f32.gmra.mrb[0].mxu0 %v462
        %v533 = vpop.f32.mrb[0].mxu0
        %v534 = vadd.f32 0.0, %v533
        %v535 = vpop.f32.mrb[0].mxu0
        %536 = vdwg.mxu0
        %vm537 = vcmask 64512
        %538 = vst.msk [vmem:[%s277] sm:$0xff] %vm537, %v534
        %s539 = scalar_lea.vmem %s4, 32
        %v540 = vld [vmem:[%s539] sm:$0xff]
        %v541 = vld [vmem:[%s539 + $0x8] sm:$0xff]
        %v542 = vld [vmem:[%s539 + $0x10] sm:$0xff]
        %v543 = vld [vmem:[%s539 + $0x18] sm:$0xff]
        %s544 = scalar_lea.vmem %s5, 1
        %v545 = vld [vmem:[%s544] sm:$0x1]
        %v547 = vlaneseq
        %v548 = vshrl.u32 %v547, 7
        %v549 = vsub.s32 0, %v548
        %v550 = vrot.slane %v545, %v549
        %552 = vmatprep.subr.mxu0 0.0
        %553 = vmatpush1.msra.mxu0 %v540
        %554 = vmatprep.subr.mxu0 0.0
        %555 = vmatpush1.msra.mxu0 %v541
        %556 = vmatprep.subr.mxu0 0.0
        %557 = vmatpush1.msra.mxu0 %v542
        %558 = vmatprep.subr.mxu0 0.0
        %559 = vmatpush1.msra.mxu0 %v543
        %560 = vmatprep.subr.mxu0 0.0
        %561 = vmatpush1.msra.mxu0 0.0
        %562 = vmatprep.subr.mxu0 0.0
        %563 = vmatpush1.msra.mxu0 0.0
        %564 = vmatprep.subr.mxu0 0.0
        %565 = vmatpush1.msra.mxu0 0.0
        %566 = vmatprep.subr.mxu0 0.0
        %567 = vmatpush1.msra.mxu0 0.0
        %568 = vmatprep.subr.mxu0 0.0
        %569 = vmatpush1.msra.mxu0 0.0
        %570 = vmatprep.subr.mxu0 0.0
        %571 = vmatpush1.msra.mxu0 0.0
        %572 = vmatprep.subr.mxu0 0.0
        %573 = vmatpush1.msra.mxu0 0.0
        %574 = vmatprep.subr.mxu0 0.0
        %575 = vmatpush1.msra.mxu0 0.0
        %576 = vmatprep.subr.mxu0 0.0
        %577 = vmatpush1.msra.mxu0 0.0
        %578 = vmatprep.subr.mxu0 0.0
        %579 = vmatpush1.msra.mxu0 0.0
        %580 = vmatprep.subr.mxu0 0.0
        %581 = vmatpush1.msra.mxu0 0.0
        %582 = vmatprep.subr.mxu0 0.0
        %583 = vmatpush1.msra.mxu0 0.0
        %584 = vmatprep.subr.mxu0 0.0
        %585 = vmatpush1.msra.mxu0 0.0
        %586 = vmatprep.subr.mxu0 0.0
        %587 = vmatpush1.msra.mxu0 0.0
        %588 = vmatprep.subr.mxu0 0.0
        %589 = vmatpush1.msra.mxu0 0.0
        %590 = vmatprep.subr.mxu0 0.0
        %591 = vmatpush1.msra.mxu0 0.0
        %592 = vmatprep.subr.mxu0 0.0
        %593 = vmatpush1.msra.mxu0 0.0
        %594 = vmatprep.subr.mxu0 0.0
        %595 = vmatpush1.msra.mxu0 0.0
        %596 = vmatprep.subr.mxu0 0.0
        %597 = vmatpush1.msra.mxu0 0.0
        %598 = vmatprep.subr.mxu0 0.0
        %599 = vmatpush1.msra.mxu0 0.0
        %600 = vmatprep.subr.mxu0 0.0
        %601 = vmatpush1.msra.mxu0 0.0
        %602 = vmatprep.subr.mxu0 0.0
        %603 = vmatpush1.msra.mxu0 0.0
        %604 = vmatprep.subr.mxu0 0.0
        %605 = vmatpush1.msra.mxu0 0.0
        %606 = vmatprep.subr.mxu0 0.0
        %607 = vmatpush1.msra.mxu0 0.0
        %608 = vmatprep.subr.mxu0 0.0
        %609 = vmatpush1.msra.mxu0 0.0
        %610 = vmatprep.subr.mxu0 0.0
        %611 = vmatpush1.msra.mxu0 0.0
        %612 = vmatprep.subr.mxu0 0.0
        %613 = vmatpush1.msra.mxu0 0.0
        %614 = vmatprep.subr.mxu0 0.0
        %615 = vmatpush1.msra.mxu0 0.0
        %616 = vmatprep.mubr.f32.mxu0 0.0
        %617 = vmatmul.mubr.f32.gmra.mrb[0].mxu0 %v388
        %v618 = vpop.f32.mrb[0].mxu0
        %v619 = vadd.f32 %v550, %v618
        %v620 = vpop.f32.mrb[0].mxu0
        %621 = vdwg.mxu0
        %v623 = vsel %vm460, %v619, 0
        %625 = vmatprep.subr.mxu0 0.0
        %626 = vmatpush1.xpose.msra.mxu0 %v465
        %627 = vmatprep.subr.mxu0 0.0
        %628 = vmatpush1.xpose.msra.mxu0 0.0
        %629 = vmatprep.subr.mxu0 0.0
        %630 = vmatpush1.xpose.msra.mxu0 0.0
        %631 = vmatprep.subr.mxu0 0.0
        %632 = vmatpush1.xpose.msra.mxu0 0.0
        %633 = vmatprep.subr.mxu0 0.0
        %634 = vmatpush1.xpose.msra.mxu0 0.0
        %635 = vmatprep.subr.mxu0 0.0
        %636 = vmatpush1.xpose.msra.mxu0 0.0
        %637 = vmatprep.subr.mxu0 0.0
        %638 = vmatpush1.xpose.msra.mxu0 0.0
        %639 = vmatprep.subr.mxu0 0.0
        %640 = vmatpush1.xpose.msra.mxu0 0.0
        %641 = vmatprep.subr.mxu0 0.0
        %642 = vmatpush1.xpose.msra.mxu0 0.0
        %643 = vmatprep.subr.mxu0 0.0
        %644 = vmatpush1.xpose.msra.mxu0 0.0
        %645 = vmatprep.subr.mxu0 0.0
        %646 = vmatpush1.xpose.msra.mxu0 0.0
        %647 = vmatprep.subr.mxu0 0.0
        %648 = vmatpush1.xpose.msra.mxu0 0.0
        %649 = vmatprep.subr.mxu0 0.0
        %650 = vmatpush1.xpose.msra.mxu0 0.0
        %651 = vmatprep.subr.mxu0 0.0
        %652 = vmatpush1.xpose.msra.mxu0 0.0
        %653 = vmatprep.subr.mxu0 0.0
        %654 = vmatpush1.xpose.msra.mxu0 0.0
        %655 = vmatprep.subr.mxu0 0.0
        %656 = vmatpush1.xpose.msra.mxu0 0.0
        %657 = vmatprep.subr.mxu0 0.0
        %658 = vmatpush1.xpose.msra.mxu0 0.0
        %659 = vmatprep.subr.mxu0 0.0
        %660 = vmatpush1.xpose.msra.mxu0 0.0
        %661 = vmatprep.subr.mxu0 0.0
        %662 = vmatpush1.xpose.msra.mxu0 0.0
        %663 = vmatprep.subr.mxu0 0.0
        %664 = vmatpush1.xpose.msra.mxu0 0.0
        %665 = vmatprep.subr.mxu0 0.0
        %666 = vmatpush1.xpose.msra.mxu0 0.0
        %667 = vmatprep.subr.mxu0 0.0
        %668 = vmatpush1.xpose.msra.mxu0 0.0
        %669 = vmatprep.subr.mxu0 0.0
        %670 = vmatpush1.xpose.msra.mxu0 0.0
        %671 = vmatprep.subr.mxu0 0.0
        %672 = vmatpush1.xpose.msra.mxu0 0.0
        %673 = vmatprep.subr.mxu0 0.0
        %674 = vmatpush1.xpose.msra.mxu0 0.0
        %675 = vmatprep.subr.mxu0 0.0
        %676 = vmatpush1.xpose.msra.mxu0 0.0
        %677 = vmatprep.subr.mxu0 0.0
        %678 = vmatpush1.xpose.msra.mxu0 0.0
        %679 = vmatprep.subr.mxu0 0.0
        %680 = vmatpush1.xpose.msra.mxu0 0.0
        %681 = vmatprep.subr.mxu0 0.0
        %682 = vmatpush1.xpose.msra.mxu0 0.0
        %683 = vmatprep.subr.mxu0 0.0
        %684 = vmatpush1.xpose.msra.mxu0 0.0
        %685 = vmatprep.subr.mxu0 0.0
        %686 = vmatpush1.xpose.msra.mxu0 0.0
        %687 = vmatprep.subr.mxu0 0.0
        %688 = vmatpush1.xpose.msra.mxu0 0.0
        %689 = vmatprep.mubr.f32.mxu0 0.0
        %690 = vmatmul.mubr.f32.gmra.mrb[0].mxu0 %v623
        %v691 = vpop.f32.mrb[0].mxu0
        %v692 = vadd.f32 0.0, %v691
        %v693 = vpop.f32.mrb[0].mxu0
        %694 = vdwg.mxu0
        %s695 = scalar_lea.vmem %s277, 8 [#allocation2]
        %696 = vst.msk [vmem:[%s695] sm:$0xff] %vm537, %v692
        %s697 = scalar_lea.vmem %s4, 64
        %v698 = vld [vmem:[%s697] sm:$0xff]
        %v699 = vld [vmem:[%s697 + $0x8] sm:$0xff]
        %v700 = vld [vmem:[%s697 + $0x10] sm:$0xff]
        %v701 = vld [vmem:[%s697 + $0x18] sm:$0xff]
        %s702 = scalar_lea.vmem %s5, 2
        %v703 = vld [vmem:[%s702] sm:$0x1]
        %v705 = vlaneseq
        %v706 = vshrl.u32 %v705, 7
        %v707 = vsub.s32 0, %v706
        %v708 = vrot.slane %v703, %v707
        %710 = vmatprep.subr.mxu0 0.0
        %711 = vmatpush1.msra.mxu0 %v698
        %712 = vmatprep.subr.mxu0 0.0
        %713 = vmatpush1.msra.mxu0 %v699
        %714 = vmatprep.subr.mxu0 0.0
        %715 = vmatpush1.msra.mxu0 %v700
        %716 = vmatprep.subr.mxu0 0.0
        %717 = vmatpush1.msra.mxu0 %v701
        %718 = vmatprep.subr.mxu0 0.0
        %719 = vmatpush1.msra.mxu0 0.0
        %720 = vmatprep.subr.mxu0 0.0
        %721 = vmatpush1.msra.mxu0 0.0
        %722 = vmatprep.subr.mxu0 0.0
        %723 = vmatpush1.msra.mxu0 0.0
        %724 = vmatprep.subr.mxu0 0.0
        %725 = vmatpush1.msra.mxu0 0.0
        %726 = vmatprep.subr.mxu0 0.0
        %727 = vmatpush1.msra.mxu0 0.0
        %728 = vmatprep.subr.mxu0 0.0
        %729 = vmatpush1.msra.mxu0 0.0
        %730 = vmatprep.subr.mxu0 0.0
        %731 = vmatpush1.msra.mxu0 0.0
        %732 = vmatprep.subr.mxu0 0.0
        %733 = vmatpush1.msra.mxu0 0.0
        %734 = vmatprep.subr.mxu0 0.0
        %735 = vmatpush1.msra.mxu0 0.0
        %736 = vmatprep.subr.mxu0 0.0
        %737 = vmatpush1.msra.mxu0 0.0
        %738 = vmatprep.subr.mxu0 0.0
        %739 = vmatpush1.msra.mxu0 0.0
        %740 = vmatprep.subr.mxu0 0.0
        %741 = vmatpush1.msra.mxu0 0.0
        %742 = vmatprep.subr.mxu0 0.0
        %743 = vmatpush1.msra.mxu0 0.0
        %744 = vmatprep.subr.mxu0 0.0
        %745 = vmatpush1.msra.mxu0 0.0
        %746 = vmatprep.subr.mxu0 0.0
        %747 = vmatpush1.msra.mxu0 0.0
        %748 = vmatprep.subr.mxu0 0.0
        %749 = vmatpush1.msra.mxu0 0.0
        %750 = vmatprep.subr.mxu0 0.0
        %751 = vmatpush1.msra.mxu0 0.0
        %752 = vmatprep.subr.mxu0 0.0
        %753 = vmatpush1.msra.mxu0 0.0
        %754 = vmatprep.subr.mxu0 0.0
        %755 = vmatpush1.msra.mxu0 0.0
        %756 = vmatprep.subr.mxu0 0.0
        %757 = vmatpush1.msra.mxu0 0.0
        %758 = vmatprep.subr.mxu0 0.0
        %759 = vmatpush1.msra.mxu0 0.0
        %760 = vmatprep.subr.mxu0 0.0
        %761 = vmatpush1.msra.mxu0 0.0
        %762 = vmatprep.subr.mxu0 0.0
        %763 = vmatpush1.msra.mxu0 0.0
        %764 = vmatprep.subr.mxu0 0.0
        %765 = vmatpush1.msra.mxu0 0.0
        %766 = vmatprep.subr.mxu0 0.0
        %767 = vmatpush1.msra.mxu0 0.0
        %768 = vmatprep.subr.mxu0 0.0
        %769 = vmatpush1.msra.mxu0 0.0
        %770 = vmatprep.subr.mxu0 0.0
        %771 = vmatpush1.msra.mxu0 0.0
        %772 = vmatprep.subr.mxu0 0.0
        %773 = vmatpush1.msra.mxu0 0.0
        %774 = vmatprep.mubr.f32.mxu0 0.0
        %775 = vmatmul.mubr.f32.gmra.mrb[0].mxu0 %v388
        %v776 = vpop.f32.mrb[0].mxu0
        %v777 = vadd.f32 %v708, %v776
        %v778 = vpop.f32.mrb[0].mxu0
        %779 = vdwg.mxu0
        %v781 = vsel %vm460, %v777, 0
        %783 = vmatprep.subr.mxu0 0.0
        %784 = vmatpush1.xpose.msra.mxu0 %v465
        %785 = vmatprep.subr.mxu0 0.0
        %786 = vmatpush1.xpose.msra.mxu0 0.0
        %787 = vmatprep.subr.mxu0 0.0
        %788 = vmatpush1.xpose.msra.mxu0 0.0
        %789 = vmatprep.subr.mxu0 0.0
        %790 = vmatpush1.xpose.msra.mxu0 0.0
        %791 = vmatprep.subr.mxu0 0.0
        %792 = vmatpush1.xpose.msra.mxu0 0.0
        %793 = vmatprep.subr.mxu0 0.0
        %794 = vmatpush1.xpose.msra.mxu0 0.0
        %795 = vmatprep.subr.mxu0 0.0
        %796 = vmatpush1.xpose.msra.mxu0 0.0
        %797 = vmatprep.subr.mxu0 0.0
        %798 = vmatpush1.xpose.msra.mxu0 0.0
        %799 = vmatprep.subr.mxu0 0.0
        %800 = vmatpush1.xpose.msra.mxu0 0.0
        %801 = vmatprep.subr.mxu0 0.0
        %802 = vmatpush1.xpose.msra.mxu0 0.0
        %803 = vmatprep.subr.mxu0 0.0
        %804 = vmatpush1.xpose.msra.mxu0 0.0
        %805 = vmatprep.subr.mxu0 0.0
        %806 = vmatpush1.xpose.msra.mxu0 0.0
        %807 = vmatprep.subr.mxu0 0.0
        %808 = vmatpush1.xpose.msra.mxu0 0.0
        %809 = vmatprep.subr.mxu0 0.0
        %810 = vmatpush1.xpose.msra.mxu0 0.0
        %811 = vmatprep.subr.mxu0 0.0
        %812 = vmatpush1.xpose.msra.mxu0 0.0
        %813 = vmatprep.subr.mxu0 0.0
        %814 = vmatpush1.xpose.msra.mxu0 0.0
        %815 = vmatprep.subr.mxu0 0.0
        %816 = vmatpush1.xpose.msra.mxu0 0.0
        %817 = vmatprep.subr.mxu0 0.0
        %818 = vmatpush1.xpose.msra.mxu0 0.0
        %819 = vmatprep.subr.mxu0 0.0
        %820 = vmatpush1.xpose.msra.mxu0 0.0
        %821 = vmatprep.subr.mxu0 0.0
        %822 = vmatpush1.xpose.msra.mxu0 0.0
        %823 = vmatprep.subr.mxu0 0.0
        %824 = vmatpush1.xpose.msra.mxu0 0.0
        %825 = vmatprep.subr.mxu0 0.0
        %826 = vmatpush1.xpose.msra.mxu0 0.0
        %827 = vmatprep.subr.mxu0 0.0
        %828 = vmatpush1.xpose.msra.mxu0 0.0
        %829 = vmatprep.subr.mxu0 0.0
        %830 = vmatpush1.xpose.msra.mxu0 0.0
        %831 = vmatprep.subr.mxu0 0.0
        %832 = vmatpush1.xpose.msra.mxu0 0.0
        %833 = vmatprep.subr.mxu0 0.0
        %834 = vmatpush1.xpose.msra.mxu0 0.0
        %835 = vmatprep.subr.mxu0 0.0
        %836 = vmatpush1.xpose.msra.mxu0 0.0
        %837 = vmatprep.subr.mxu0 0.0
        %838 = vmatpush1.xpose.msra.mxu0 0.0
        %839 = vmatprep.subr.mxu0 0.0
        %840 = vmatpush1.xpose.msra.mxu0 0.0
        %841 = vmatprep.subr.mxu0 0.0
        %842 = vmatpush1.xpose.msra.mxu0 0.0
        %843 = vmatprep.subr.mxu0 0.0
        %844 = vmatpush1.xpose.msra.mxu0 0.0
        %845 = vmatprep.subr.mxu0 0.0
        %846 = vmatpush1.xpose.msra.mxu0 0.0
        %847 = vmatprep.mubr.f32.mxu0 0.0
        %848 = vmatmul.mubr.f32.gmra.mrb[0].mxu0 %v781
        %v849 = vpop.f32.mrb[0].mxu0
        %v850 = vadd.f32 0.0, %v849
        %v851 = vpop.f32.mrb[0].mxu0
        %852 = vdwg.mxu0
        %s853 = scalar_lea.vmem %s277, 16 [#allocation2]
        %854 = vst.msk [vmem:[%s853] sm:$0xff] %vm537, %v850
        %s855 = scalar_lea.vmem %s4, 96
        %v856 = vld [vmem:[%s855] sm:$0xff]
        %v857 = vld [vmem:[%s855 + $0x8] sm:$0xff]
        %v858 = vld [vmem:[%s855 + $0x10] sm:$0xff]
        %v859 = vld [vmem:[%s855 + $0x18] sm:$0xff]
        %s860 = scalar_lea.vmem %s5, 3
        %v861 = vld [vmem:[%s860] sm:$0x1]
        %v863 = vlaneseq
        %v864 = vshrl.u32 %v863, 7
        %v865 = vsub.s32 0, %v864
        %v866 = vrot.slane %v861, %v865
        %868 = vmatprep.subr.mxu0 0.0
        %869 = vmatpush1.msra.mxu0 %v856
        %870 = vmatprep.subr.mxu0 0.0
        %871 = vmatpush1.msra.mxu0 %v857
        %872 = vmatprep.subr.mxu0 0.0
        %873 = vmatpush1.msra.mxu0 %v858
        %874 = vmatprep.subr.mxu0 0.0
        %875 = vmatpush1.msra.mxu0 %v859
        %876 = vmatprep.subr.mxu0 0.0
        %877 = vmatpush1.msra.mxu0 0.0
        %878 = vmatprep.subr.mxu0 0.0
        %879 = vmatpush1.msra.mxu0 0.0
        %880 = vmatprep.subr.mxu0 0.0
        %881 = vmatpush1.msra.mxu0 0.0
        %882 = vmatprep.subr.mxu0 0.0
        %883 = vmatpush1.msra.mxu0 0.0
        %884 = vmatprep.subr.mxu0 0.0
        %885 = vmatpush1.msra.mxu0 0.0
        %886 = vmatprep.subr.mxu0 0.0
        %887 = vmatpush1.msra.mxu0 0.0
        %888 = vmatprep.subr.mxu0 0.0
        %889 = vmatpush1.msra.mxu0 0.0
        %890 = vmatprep.subr.mxu0 0.0
        %891 = vmatpush1.msra.mxu0 0.0
        %892 = vmatprep.subr.mxu0 0.0
        %893 = vmatpush1.msra.mxu0 0.0
        %894 = vmatprep.subr.mxu0 0.0
        %895 = vmatpush1.msra.mxu0 0.0
        %896 = vmatprep.subr.mxu0 0.0
        %897 = vmatpush1.msra.mxu0 0.0
        %898 = vmatprep.subr.mxu0 0.0
        %899 = vmatpush1.msra.mxu0 0.0
        %900 = vmatprep.subr.mxu0 0.0
        %901 = vmatpush1.msra.mxu0 0.0
        %902 = vmatprep.subr.mxu0 0.0
        %903 = vmatpush1.msra.mxu0 0.0
        %904 = vmatprep.subr.mxu0 0.0
        %905 = vmatpush1.msra.mxu0 0.0
        %906 = vmatprep.subr.mxu0 0.0
        %907 = vmatpush1.msra.mxu0 0.0
        %908 = vmatprep.subr.mxu0 0.0
        %909 = vmatpush1.msra.mxu0 0.0
        %910 = vmatprep.subr.mxu0 0.0
        %911 = vmatpush1.msra.mxu0 0.0
        %912 = vmatprep.subr.mxu0 0.0
        %913 = vmatpush1.msra.mxu0 0.0
        %914 = vmatprep.subr.mxu0 0.0
        %915 = vmatpush1.msra.mxu0 0.0
        %916 = vmatprep.subr.mxu0 0.0
        %917 = vmatpush1.msra.mxu0 0.0
        %918 = vmatprep.subr.mxu0 0.0
        %919 = vmatpush1.msra.mxu0 0.0
        %920 = vmatprep.subr.mxu0 0.0
        %921 = vmatpush1.msra.mxu0 0.0
        %922 = vmatprep.subr.mxu0 0.0
        %923 = vmatpush1.msra.mxu0 0.0
        %924 = vmatprep.subr.mxu0 0.0
        %925 = vmatpush1.msra.mxu0 0.0
        %926 = vmatprep.subr.mxu0 0.0
        %927 = vmatpush1.msra.mxu0 0.0
        %928 = vmatprep.subr.mxu0 0.0
        %929 = vmatpush1.msra.mxu0 0.0
        %930 = vmatprep.subr.mxu0 0.0
        %931 = vmatpush1.msra.mxu0 0.0
        %932 = vmatprep.mubr.f32.mxu0 0.0
        %933 = vmatmul.mubr.f32.gmra.mrb[0].mxu0 %v388
        %v934 = vpop.f32.mrb[0].mxu0
        %v935 = vadd.f32 %v866, %v934
        %v936 = vpop.f32.mrb[0].mxu0
        %937 = vdwg.mxu0
        %v939 = vsel %vm460, %v935, 0
        %941 = vmatprep.subr.mxu0 0.0
        %942 = vmatpush1.xpose.msra.mxu0 %v465
        %943 = vmatprep.subr.mxu0 0.0
        %944 = vmatpush1.xpose.msra.mxu0 0.0
        %945 = vmatprep.subr.mxu0 0.0
        %946 = vmatpush1.xpose.msra.mxu0 0.0
        %947 = vmatprep.subr.mxu0 0.0
        %948 = vmatpush1.xpose.msra.mxu0 0.0
        %949 = vmatprep.subr.mxu0 0.0
        %950 = vmatpush1.xpose.msra.mxu0 0.0
        %951 = vmatprep.subr.mxu0 0.0
        %952 = vmatpush1.xpose.msra.mxu0 0.0
        %953 = vmatprep.subr.mxu0 0.0
        %954 = vmatpush1.xpose.msra.mxu0 0.0
        %955 = vmatprep.subr.mxu0 0.0
        %956 = vmatpush1.xpose.msra.mxu0 0.0
        %957 = vmatprep.subr.mxu0 0.0
        %958 = vmatpush1.xpose.msra.mxu0 0.0
        %959 = vmatprep.subr.mxu0 0.0
        %960 = vmatpush1.xpose.msra.mxu0 0.0
        %961 = vmatprep.subr.mxu0 0.0
        %962 = vmatpush1.xpose.msra.mxu0 0.0
        %963 = vmatprep.subr.mxu0 0.0
        %964 = vmatpush1.xpose.msra.mxu0 0.0
        %965 = vmatprep.subr.mxu0 0.0
        %966 = vmatpush1.xpose.msra.mxu0 0.0
        %967 = vmatprep.subr.mxu0 0.0
        %968 = vmatpush1.xpose.msra.mxu0 0.0
        %969 = vmatprep.subr.mxu0 0.0
        %970 = vmatpush1.xpose.msra.mxu0 0.0
        %971 = vmatprep.subr.mxu0 0.0
        %972 = vmatpush1.xpose.msra.mxu0 0.0
        %973 = vmatprep.subr.mxu0 0.0
        %974 = vmatpush1.xpose.msra.mxu0 0.0
        %975 = vmatprep.subr.mxu0 0.0
        %976 = vmatpush1.xpose.msra.mxu0 0.0
        %977 = vmatprep.subr.mxu0 0.0
        %978 = vmatpush1.xpose.msra.mxu0 0.0
        %979 = vmatprep.subr.mxu0 0.0
        %980 = vmatpush1.xpose.msra.mxu0 0.0
        %981 = vmatprep.subr.mxu0 0.0
        %982 = vmatpush1.xpose.msra.mxu0 0.0
        %983 = vmatprep.subr.mxu0 0.0
        %984 = vmatpush1.xpose.msra.mxu0 0.0
        %985 = vmatprep.subr.mxu0 0.0
        %986 = vmatpush1.xpose.msra.mxu0 0.0
        %987 = vmatprep.subr.mxu0 0.0
        %988 = vmatpush1.xpose.msra.mxu0 0.0
        %989 = vmatprep.subr.mxu0 0.0
        %990 = vmatpush1.xpose.msra.mxu0 0.0
        %991 = vmatprep.subr.mxu0 0.0
        %992 = vmatpush1.xpose.msra.mxu0 0.0
        %993 = vmatprep.subr.mxu0 0.0
        %994 = vmatpush1.xpose.msra.mxu0 0.0
        %995 = vmatprep.subr.mxu0 0.0
        %996 = vmatpush1.xpose.msra.mxu0 0.0
        %997 = vmatprep.subr.mxu0 0.0
        %998 = vmatpush1.xpose.msra.mxu0 0.0
        %999 = vmatprep.subr.mxu0 0.0
        %1000 = vmatpush1.xpose.msra.mxu0 0.0
        %1001 = vmatprep.subr.mxu0 0.0
        %1002 = vmatpush1.xpose.msra.mxu0 0.0
        %1003 = vmatprep.subr.mxu0 0.0
        %1004 = vmatpush1.xpose.msra.mxu0 0.0
        %1005 = vmatprep.mubr.f32.mxu0 0.0
        %1006 = vmatmul.mubr.f32.gmra.mrb[0].mxu0 %v939
        %v1007 = vpop.f32.mrb[0].mxu0
        %v1008 = vadd.f32 0.0, %v1007
        %v1009 = vpop.f32.mrb[0].mxu0
        %1010 = vdwg.mxu0
        %s1011 = scalar_lea.vmem %s277, 24 [#allocation2]
        %1012 = vst.msk [vmem:[%s1011] sm:$0xff] %vm537, %v1008
        %s1013 = sand.u32 %s180, 1
        %s1014 = scalar_lea.sflag [#allocation3], %s1013
        %s1015 = sand.u32 %s180, 1
        %s1016 = smul.addr %s1015, 32
        %s1017 = scalar_lea.vmem [#allocation2], %s1016
        // Predicated region
        $region45: #{tpu_custom_call.1} parent=43 // pred_check
          %p1018 = pneg %p190
        $region46: #{tpu_custom_call.1} parent=43 // pred_check_branch
          %1020 = sbr.rel (%p1018) target = $region48
        $region47: #{tpu_custom_call.1} parent=43 // pred_region
          %s1022 = ssub.s32 512, 512
          %1023 = vsyncadd %s1014, %s1022
          %s1024 = smul.addr %s24, 4
          %s1025 = sadd.s32 %s25, %s1024
          %s1026 = smul.addr %s1025, 128
          %s1027 = scalar_lea.hbm %s6, %s1026
          %s1028 = sshll.u32 %s1017, 4
          %s1029 = int_to_ptr.vmem [resolvable:$true] %s1028
          %1034 = dma.vmem_to_hbm [thread:$0]  %s1029, 512, %s1027, %s1014, 128, 128, 8
        $region48: #{tpu_custom_call.1} parent=43 // pred_fallthru
          _
      $region44: #{tpu_custom_call.1} parent=5 // pred_fallthru
        _
      %p1035 = scmp.le.s32.totalorder 2, %s15
      // Predicated region
      $region49: #{tpu_custom_call.1} parent=5 // pred_check
        %p1036 = pneg %p1035
      $region50: #{tpu_custom_call.1} parent=5 // pred_check_branch
        %1038 = sbr.rel (%p1036) target = $region52
      $region51: #{tpu_custom_call.1} parent=5 // pred_region
        %s1039 = ssub.s32 %s15, 2
        // Predicated region
        $region53: #{tpu_custom_call.1} parent=51 // pred_check
          %p1040 = pneg %p196
        $region54: #{tpu_custom_call.1} parent=51 // pred_check_branch
          %1042 = sbr.rel (%p1040) target = $region56
        $region55: #{tpu_custom_call.1} parent=51 // pred_region
          %s1043 = sand.u32 %s181, 1
          %s1044 = scalar_lea.sflag [#allocation3], %s1043
          %s1045 = sand.u32 %s181, 1
          %s1046 = smul.addr %s1045, 32
          %s1047 = scalar_lea.vmem [#allocation2], %s1046
          %1048 = dma.done %s1044, 512
        $region56: #{tpu_custom_call.1} parent=51 // pred_fallthru
          _
      $region52: #{tpu_custom_call.1} parent=5 // pred_fallthru
        _
    $region6: #{tpu_custom_call.1} parent=1 // loop_footer
      %s19 = sadd.s32 1, %s15
    $region7: #{tpu_custom_call.1} parent=1 // loop_footer_branch
      %14 = sbr.rel target = $region3
    $region8: #{tpu_custom_call.1} parent=1 // loop_exit
      _
    %1049 = vsyncpa [#allocation3], 1
    %s1050 = scalar_lea.sflag [#allocation3], 1
    %1051 = vsyncpa %s1050, 1

</llo_original>
